<compile_context>
chip_gen: v7x
topology: tpu7x:2x2x1
jax: 0.10.0
libtpu: 0.0.40
codegen_flags: <defaults>
</compile_context>

<pallas_src>
import functools

import numpy as np
import jax
import jax.numpy as jnp
from jax import lax
from jax.experimental import pallas as pl
from jax.experimental.pallas import tpu as pltpu


def _shifted_reflect(x, k, T):
    """Shift a (C_tile, T) slab by static k along the last axis w/ reflection."""
    if k == 0:
        return x
    if k > 0:
        # out[i] = x[k - i] for i < k ; x[i - k] otherwise.
        left = [x[:, d:d + 1] for d in range(k, 0, -1)]          # x[:,k] ... x[:,1]
        return jnp.concatenate(left + [x[:, :T - k]], axis=-1)
    m = -k
    # out[i] = x[i + m] for i < T - m ; x[2(T-1) - (i + m)] otherwise.
    right = [x[:, T - 1 - d:T - d] for d in range(1, m + 1)]      # x[:,T-2] ... x[:,T-1-m]
    return jnp.concatenate([x[:, m:]] + right, axis=-1)


def phase_shuffle_kernel(k_ref, x_ref, o_ref, *, shift_factor, T):
    """One grid step = one (batch, C-tile) block.

    k_ref : SMEM (B,) int32  — per-batch shifts (scalar prefetch)
    x_ref : VMEM (1, tc, T)
    o_ref : VMEM (1, tc, T)
    """
    b = pl.program_id(0)
    k = k_ref[b]
    x = x_ref[0]                                   # (tc, T), native dtype

    # Select among the 2*shift_factor+1 statically-shifted candidates.
    # Pure data-flow (no control flow); work is O((2*sf+1) * tc * T) lane
    # shuffles/selects, hidden under the HBM DMA for small shift_factor.
    out = x                                        # k == 0 candidate
    for k_val in range(-shift_factor, shift_factor + 1):
        if k_val == 0:
            continue
        out = jnp.where(k == k_val, _shifted_reflect(x, k_val, T), out)
    o_ref[0] = out


def _choose_c_tile(C, T, itemsize):
    """Sublane-aligned divisor of C keeping each block comfortably in VMEM."""
    budget = 2 * 1024 * 1024                       # bytes per (tc, T) block
    tc = C
    while tc % 16 == 0 and tc * T * itemsize > budget:
        tc //= 2                                   # stays a multiple of 8 and a divisor of C
    return tc


def phase_shuffle(x, k_list, shift_factor):
    """Apply phase shuffle with per-batch shifts k_list (int32, shape (B,))."""
    if shift_factor == 0:
        return x
    B, C, T = x.shape
    if shift_factor >= T:
        raise ValueError("shift_factor must be < T for single-bounce reflection")

    tc = _choose_c_tile(C, T, x.dtype.itemsize)
    kernel = functools.partial(phase_shuffle_kernel,
                               shift_factor=shift_factor, T=T)
    return pl.pallas_call(
        kernel,
        out_shape=jax.ShapeDtypeStruct((B, C, T), x.dtype),
        grid_spec=pltpu.PrefetchScalarGridSpec(
            num_scalar_prefetch=1,
            grid=(B, C // tc),
            # index_maps receive the scalar-prefetch ref as a trailing arg.
            in_specs=[pl.BlockSpec((1, tc, T), lambda b, c, kref: (b, c, 0))],
            out_specs=pl.BlockSpec((1, tc, T), lambda b, c, kref: (b, c, 0)),
        ),
        compiler_params=pltpu.CompilerParams(
            dimension_semantics=("parallel", "parallel")),
    )(k_list, x)


def phase_shuffle_ref(x, k_list):
    """Pure-NumPy reference matching the WaveGAN PhaseShuffle module."""
    x = np.asarray(x)
    B, C, T = x.shape
    out = np.empty_like(x)
    for b in range(B):
        k = int(k_list[b])
        i = np.arange(T)
        j = i - k
        src = np.where(j < 0, -j, np.where(j >= T, 2 * (T - 1) - j, j))
        out[b] = x[b][:, src]
    return out


if __name__ == "__main__":
    shift_factor = 2
    B, C, T = 2, 4, 16

    key = jax.random.PRNGKey(0)
    kx, kk = jax.random.split(key)
    x = jax.random.normal(kx, (B, C, T), dtype=jnp.float32)
    # Random per-batch shift in {-shift_factor, ..., +shift_factor},
    # mirroring torch.Tensor.random_(0, 2n+1) - n.
    k_list = (jax.random.randint(kk, (B,), 0, 2 * shift_factor + 1)
              - shift_factor).astype(jnp.int32)

    out = phase_shuffle(x, k_list, shift_factor)
    out = jax.block_until_ready(out)

    ref = phase_shuffle_ref(x, np.asarray(k_list))
    np.testing.assert_allclose(np.asarray(out), ref, atol=0.0, rtol=0.0)

    print("KERNEL_OK")
</pallas_src>

<mosaic_0001>
module attributes {stable_mosaic.version = 11 : i64} {
  func.func @phase_shuffle_kernel(%arg0: i32, %arg1: i32, %arg2: memref<2xi32, #tpu.memory_space<smem>>, %arg3: memref<1x4x16xf32, #tpu.memory_space<vmem>>, %arg4: memref<1x4x16xf32, #tpu.memory_space<vmem>>) attributes {dimension_semantics = [#tpu.dimension_semantics<parallel>, #tpu.dimension_semantics<parallel>], iteration_bounds = array<i64: 2, 1>, scalar_prefetch = 1 : i64, scratch_operands = 0 : i64, tpu.core_type = #tpu.core_type<tc>, window_params = [{transform_indices = @transform_0, window_bounds = array<i64: 1, 4, 16>}, {transform_indices = @transform_1, window_bounds = array<i64: 1, 4, 16>}]} {
    %0 = arith.index_cast %arg0 : i32 to index
    %1 = memref.load %arg2[%0] : memref<2xi32, #tpu.memory_space<smem>>
    %c0 = arith.constant 0 : index
    %c0_0 = arith.constant 0 : index
    %c0_1 = arith.constant 0 : index
    %2 = vector.load %arg3[%c0, %c0_0, %c0_1] : memref<1x4x16xf32, #tpu.memory_space<vmem>>, vector<1x4x16xf32>
    %3 = vector.shape_cast %2 : vector<1x4x16xf32> to vector<4x16xf32>
    %c-2_i32 = arith.constant -2 : i32
    %4 = arith.cmpi eq, %1, %c-2_i32 : i32
    %5 = vector.extract_strided_slice %3 {offsets = [0, 14], sizes = [4, 1], strides = [1, 1]} : vector<4x16xf32> to vector<4x1xf32>
    %6 = vector.extract_strided_slice %3 {offsets = [0, 13], sizes = [4, 1], strides = [1, 1]} : vector<4x16xf32> to vector<4x1xf32>
    %7 = vector.extract_strided_slice %3 {offsets = [0, 2], sizes = [4, 14], strides = [1, 1]} : vector<4x16xf32> to vector<4x14xf32>
    %8 = tpu.concatenate %7, %5, %6 in 1 : vector<4x14xf32>, vector<4x1xf32>, vector<4x1xf32> -> vector<4x16xf32>
    %9 = arith.select %4, %8, %3 : vector<4x16xf32>
    %c-1_i32 = arith.constant -1 : i32
    %10 = arith.cmpi eq, %1, %c-1_i32 : i32
    %11 = vector.extract_strided_slice %3 {offsets = [0, 14], sizes = [4, 1], strides = [1, 1]} : vector<4x16xf32> to vector<4x1xf32>
    %12 = vector.extract_strided_slice %3 {offsets = [0, 1], sizes = [4, 15], strides = [1, 1]} : vector<4x16xf32> to vector<4x15xf32>
    %13 = tpu.concatenate %12, %11 in 1 : vector<4x15xf32>, vector<4x1xf32> -> vector<4x16xf32>
    %14 = arith.select %10, %13, %9 : vector<4x16xf32>
    %c1_i32 = arith.constant 1 : i32
    %15 = arith.cmpi eq, %1, %c1_i32 : i32
    %16 = vector.extract_strided_slice %3 {offsets = [0, 1], sizes = [4, 1], strides = [1, 1]} : vector<4x16xf32> to vector<4x1xf32>
    %17 = vector.extract_strided_slice %3 {offsets = [0, 0], sizes = [4, 15], strides = [1, 1]} : vector<4x16xf32> to vector<4x15xf32>
    %18 = tpu.concatenate %16, %17 in 1 : vector<4x1xf32>, vector<4x15xf32> -> vector<4x16xf32>
    %19 = arith.select %15, %18, %14 : vector<4x16xf32>
    %c2_i32 = arith.constant 2 : i32
    %20 = arith.cmpi eq, %1, %c2_i32 : i32
    %21 = vector.extract_strided_slice %3 {offsets = [0, 2], sizes = [4, 1], strides = [1, 1]} : vector<4x16xf32> to vector<4x1xf32>
    %22 = vector.extract_strided_slice %3 {offsets = [0, 1], sizes = [4, 1], strides = [1, 1]} : vector<4x16xf32> to vector<4x1xf32>
    %23 = vector.extract_strided_slice %3 {offsets = [0, 0], sizes = [4, 14], strides = [1, 1]} : vector<4x16xf32> to vector<4x14xf32>
    %24 = tpu.concatenate %21, %22, %23 in 1 : vector<4x1xf32>, vector<4x1xf32>, vector<4x14xf32> -> vector<4x16xf32>
    %25 = arith.select %20, %24, %19 : vector<4x16xf32>
    %c0_2 = arith.constant 0 : index
    %c0_3 = arith.constant 0 : index
    %c0_4 = arith.constant 0 : index
    %26 = vector.load %arg4[%c0_2, %c0_3, %c0_4] : memref<1x4x16xf32, #tpu.memory_space<vmem>>, vector<1x4x16xf32>
    %27 = vector.shape_cast %26 : vector<1x4x16xf32> to vector<4x16xf32>
    %28 = vector.shape_cast %25 : vector<4x16xf32> to vector<1x4x16xf32>
    tpu.vector_store %arg4[%c0_2, %c0_3, %c0_4], %28 {strides = array<i32>} : memref<1x4x16xf32, #tpu.memory_space<vmem>>, vector<1x4x16xf32>,
    return
  }
  func.func @transform_0(%arg0: i32, %arg1: i32, %arg2: memref<2xi32, #tpu.memory_space<smem>>) -> (i32, i32, i32) {
    %c0_i32 = arith.constant 0 : i32
    %c0_i32_0 = arith.constant 0 : i32
    return %arg0, %arg1, %c0_i32 : i32, i32, i32
  }
  func.func @transform_1(%arg0: i32, %arg1: i32, %arg2: memref<2xi32, #tpu.memory_space<smem>>) -> (i32, i32, i32) {
    %c0_i32 = arith.constant 0 : i32
    %c0_i32_0 = arith.constant 0 : i32
    return %arg0, %arg1, %c0_i32 : i32, i32, i32
  }
}

</mosaic_0001>

<llo_original>
// kernel: tpu_custom_call.1
$region0: #{tpu_custom_call.1}
  #allocation0 [shape = 'u32[]', space=smem, size = 0x4, offset = 0x4, fixed_abs, tag = 'smem constant byte address 0x4 - core index']
  #allocation1 [shape = 'u32[144,128]{1,0:T(1,128)}', space=vmem, size = 0x12000, scoped, tag = 'internal scratch']
  #allocation2 [shape = 's32[1]{0}', space=sflag, size = 0x4, scoped, tag = 'scoped memory for tpu_custom_call.1']
  #allocation3 [shape = 'u8[512]{0}', space=smem, size = 0x200, scoped, tag = 'prefetched SMEM operand 0']
  %s0 = inlined_call_operand.hbm [shape: s32[2], index: 0, kind: input, shape index: {}]
  %s1 = inlined_call_operand.hbm [shape: f32[2,4,16], index: 1, kind: input, shape index: {}]
  %s2 = inlined_call_operand.hbm [shape: f32[2,4,16], index: 2, kind: output, shape index: {}]
  %s3 = sld [smem:[#allocation0]]
  $region41: #{tpu_custom_call.1} parent=0
    _
  %s5 = ssub.s32 1, %s3
  %s6 = scalar_select 0, %s5, %s3
  %8 = dma.hbm_to_smem %s0, 16, [#allocation3], [#allocation2]
  %9 = dma.done [#allocation2], 16
  %10 = sfence
  $region1: #{tpu_custom_call.1} parent=0
    #allocation4 [shape = 'u8[4096]{0}', space=vmem, size = 0x1000, scoped, tag = 'input window, operand 1']
    #allocation5 [shape = 's32[2]{0}', space=sflag, size = 0x8, scoped, tag = 'scoped memory for tpu_custom_call.1']
    #allocation6 [shape = 's32[2]{0}', space=sflag, size = 0x8, scoped, tag = 'scoped memory for tpu_custom_call.1']
    #allocation7 [shape = 'u8[4096]{0}', space=vmem, size = 0x1000, scoped, tag = 'output window, operand 0']
    %11 = vsyncpa [#allocation5], 0
    %s12 = scalar_lea.sflag [#allocation5], 1
    %13 = vsyncpa %s12, 0
    %14 = vsyncpa [#allocation6], 0
    %s15 = scalar_lea.sflag [#allocation6], 1
    %16 = vsyncpa %s15, 0
    loop: start=0, step=1, limit=4
    $region2: #{tpu_custom_call.1} parent=1 // loop_pre_header
      _
    $region3: #{tpu_custom_call.1} parent=1 // loop_header
      %s18 = sphi 0, %s22
      %p19 = scmp.ge.s32.totalorder %s18, 4
      %s25 = sphi 0, %s37
      %s26 = sphi 0, %s33
      %s27 = sphi 0, %s25
      %s28 = sphi 0, %s26
      %s29 = sphi 0, %s27
      %s30 = sphi 0, %s28
      %s42 = sphi 0, %s44
      %s45 = sphi 0, %s42
      %s46 = sphi 0, %s45
      %s62 = sphi 0, %s46
      %s70 = sphi 0, %s72
      %s73 = sphi 0, %s70
      %s74 = sphi 0, %s73
      %s90 = sphi 0, %s74
    $region4: #{tpu_custom_call.1} parent=1 // loop_header_branch
      %21 = sbr.rel (%p19) target = $region8
    $region5: #{tpu_custom_call.1} parent=1 // loop_body
      %s23 = ssub.s32 %s18, 1
      %s24 = ssub.s32 %s18, 2
      %s31 = sadd.s32 1, %s26
      %p32 = scmp.ge.s32.totalorder %s31, 1
      %s33 = scalar_select %p32, 0, %s31
      %s34 = sadd.s32 1, %s25
      %s35 = scalar_select %p32, %s34, %s25
      %p36 = scmp.ge.s32.totalorder %s35, 2
      %s37 = scalar_select %p36, 0, %s35
      %s38 = ssub.s32 %s25, %s37
      %s39 = ssub.s32 %s26, %s33
      %s40 = sor.u32 %s38, %s39
      %p41 = scmp.eq.s32.totalorder %s40, 0
      %s43 = sadd.s32 %s42, 1
      %s44 = scalar_select %p41, %s42, %s43
      %p47 = pneg %p41
      %p48 = scmp.eq.s32.totalorder %s18, 1
      %p49 = por %p47, %p48
      %p50 = scmp.ne.s32.totalorder %s42, %s45
      %p51 = scmp.eq.s32.totalorder %s18, 0
      %p52 = por %p50, %p51
      %p53 = scmp.ne.s32.totalorder %s42, %s45
      %p54 = scmp.eq.s32.totalorder %s23, 1
      %p55 = por %p53, %p54
      %p56 = scmp.ne.s32.totalorder %s45, %s46
      %p57 = scmp.eq.s32.totalorder %s23, 0
      %p58 = por %p56, %p57
      %p59 = scmp.ne.s32.totalorder %s45, %s46
      %p60 = scmp.eq.s32.totalorder %s24, 1
      %p61 = por %p59, %p60
      %p63 = scmp.ne.s32.totalorder %s46, %s62
      %p64 = scmp.eq.s32.totalorder %s24, 0
      %p65 = por %p63, %p64
      %s66 = ssub.s32 %s25, %s37
      %s67 = ssub.s32 %s26, %s33
      %s68 = sor.u32 %s66, %s67
      %p69 = scmp.eq.s32.totalorder %s68, 0
      %s71 = sadd.s32 %s70, 1
      %s72 = scalar_select %p69, %s70, %s71
      %p75 = pneg %p69
      %p76 = scmp.eq.s32.totalorder %s18, 1
      %p77 = por %p75, %p76
      %p78 = scmp.ne.s32.totalorder %s70, %s73
      %p79 = scmp.eq.s32.totalorder %s18, 0
      %p80 = por %p78, %p79
      %p81 = scmp.ne.s32.totalorder %s70, %s73
      %p82 = scmp.eq.s32.totalorder %s23, 1
      %p83 = por %p81, %p82
      %p84 = scmp.ne.s32.totalorder %s73, %s74
      %p85 = scmp.eq.s32.totalorder %s23, 0
      %p86 = por %p84, %p85
      %p87 = scmp.ne.s32.totalorder %s73, %s74
      %p88 = scmp.eq.s32.totalorder %s24, 1
      %p89 = por %p87, %p88
      %p91 = scmp.ne.s32.totalorder %s74, %s90
      %p92 = scmp.eq.s32.totalorder %s24, 0
      %p93 = por %p91, %p92
      %p94 = scmp.le.s32.totalorder 1, %s18
      %p95 = scmp.lt.s32.totalorder %s18, 3
      %p96 = pnand %p94, %p95
      %p97 = pneg %p96
      // Predicated region
      $region9: #{tpu_custom_call.1} parent=5 // pred_check
        _
      $region10: #{tpu_custom_call.1} parent=5 // pred_check_branch
        %99 = sbr.rel (%p96) target = $region12
      $region11: #{tpu_custom_call.1} parent=5 // pred_region
        %s100 = ssub.s32 %s18, 1
      $region12: #{tpu_custom_call.1} parent=5 // pred_fallthru
        _
      %p101 = scmp.lt.s32.totalorder %s18, 2
      // Predicated region
      $region13: #{tpu_custom_call.1} parent=5 // pred_check
        %p102 = pneg %p101
      $region14: #{tpu_custom_call.1} parent=5 // pred_check_branch
        %104 = sbr.rel (%p102) target = $region16
      $region15: #{tpu_custom_call.1} parent=5 // pred_region
        // Predicated region
        $region17: #{tpu_custom_call.1} parent=15 // pred_check
          %p105 = pneg %p52
        $region18: #{tpu_custom_call.1} parent=15 // pred_check_branch
          %107 = sbr.rel (%p105) target = $region20
        $region19: #{tpu_custom_call.1} parent=15 // pred_region
          %s108 = sand.u32 %s42, 1
          %s109 = scalar_lea.sflag [#allocation5], %s108
          %s110 = sand.u32 %s42, 1
          %s111 = smul.addr %s110, 4
          %s112 = scalar_lea.vmem [#allocation4], %s111
          %s114 = ssub.s32 64, 64
          %115 = vsyncadd %s109, %s114
          %s116 = sadd.s32 %s26, %s25
          %s117 = smul.addr %s116, 64
          %s118 = scalar_lea.hbm %s1, %s117
          %s120 = sshll.u32 %s112, 4
          %s121 = int_to_ptr.vmem [resolvable:$true] %s120
          %123 = dma.hbm_to_vmem [thread:$0]  %s118, 64, %s121, %s109
        $region20: #{tpu_custom_call.1} parent=15 // pred_fallthru
          _
      $region16: #{tpu_custom_call.1} parent=5 // pred_fallthru
        _
      %p124 = scmp.le.s32.totalorder 1, %s18
      %p125 = scmp.lt.s32.totalorder %s18, 3
      %p126 = pnand %p124, %p125
      %p127 = pneg %p126
      // Predicated region
      $region21: #{tpu_custom_call.1} parent=5 // pred_check
        _
      $region22: #{tpu_custom_call.1} parent=5 // pred_check_branch
        %129 = sbr.rel (%p126) target = $region24
      $region23: #{tpu_custom_call.1} parent=5 // pred_region
        %s130 = ssub.s32 %s18, 1
        %s131 = sand.u32 %s45, 1
        %s132 = scalar_lea.sflag [#allocation5], %s131
        %s133 = sand.u32 %s45, 1
        %s134 = smul.addr %s133, 4
        %s135 = scalar_lea.vmem [#allocation4], %s134
        // Predicated region
        $region25: #{tpu_custom_call.1} parent=23 // pred_check
          %p136 = pneg %p58
        $region26: #{tpu_custom_call.1} parent=23 // pred_check_branch
          %138 = sbr.rel (%p136) target = $region28
        $region27: #{tpu_custom_call.1} parent=23 // pred_region
          %139 = dma.done %s132, 64
        $region28: #{tpu_custom_call.1} parent=23 // pred_fallthru
          _
        %s140 = sand.u32 %s45, 1
        %s141 = scalar_lea.sflag [#allocation5], %s140
        %s142 = sand.u32 %s45, 1
        %s143 = smul.addr %s142, 4
        %s144 = scalar_lea.vmem [#allocation4], %s143
        %p145 = pneg %p58
        %p146 = pneg %p55
        %p147 = pneg %p86
        %p148 = pneg %p83
        %s149 = sand.u32 %s73, 1
        %s150 = scalar_lea.sflag [#allocation6], %s149
        %s151 = sand.u32 %s73, 1
        %s152 = smul.addr %s151, 4
        %s153 = scalar_lea.vmem [#allocation7], %s152
        %s154 = sld [smem:[#allocation3 + %s27]]
        %v155 = vld [vmem:[%s135] sm:$0xf]
        %p156 = scmp.eq.s32.totalorder %s154, 4294967294
        %158 = vrot.lane.b32.xlu0 %v155, 126
        %v159 = vpop.permute.xlu0 %158
        %161 = vrot.lane.b32.xlu0 %v155, 2
        %v162 = vpop.permute.xlu0 %161
        %vm164 = vcmask 113664
        %v165 = vsel %vm164, %v159, %v155
        %vm166 = vcmask 121856
        %v167 = vsel %vm166, %v165, %v162
        %s168 = scalar_select %p156, 1, 0
        %v169 = vstv %s168
        %vm170 = vcmp.eq.s32.totalorder %v169, 1
        %v171 = vsel %vm170, %v167, %v155
        %p172 = scmp.eq.s32.totalorder %s154, 4294967295
        %173 = vrot.lane.b32.xlu0 %v155, 127
        %v174 = vpop.permute.xlu0 %173
        %176 = vrot.lane.b32.xlu0 %v155, 1
        %v177 = vpop.permute.xlu0 %176
        %v179 = vsel %vm166, %v174, %v177
        %s180 = scalar_select %p172, 1, 0
        %v181 = vstv %s180
        %vm182 = vcmp.eq.s32.totalorder %v181, 1
        %v183 = vsel %vm182, %v179, %v171
        %p184 = scmp.eq.s32.totalorder %s154, 1
        %vm185 = vcmask 7168
        %v186 = vsel %vm185, %v174, %v177
        %s187 = scalar_select %p184, 1, 0
        %v188 = vstv %s187
        %vm189 = vcmp.eq.s32.totalorder %v188, 1
        %v190 = vsel %vm189, %v186, %v183
        %p191 = scmp.eq.s32.totalorder %s154, 2
        %v192 = vsel %vm185, %v159, %v155
        %vm193 = vcmask 15360
        %v194 = vsel %vm193, %v192, %v162
        %s195 = scalar_select %p191, 1, 0
        %v196 = vstv %s195
        %vm197 = vcmp.eq.s32.totalorder %v196, 1
        %v198 = vsel %vm197, %v194, %v190
        %vm199 = vcmask 125952
        %200 = vst.msk [vmem:[%s153] sm:$0xf] %vm199, %v198
        %s201 = sand.u32 %s73, 1
        %s202 = scalar_lea.sflag [#allocation6], %s201
        %s203 = sand.u32 %s73, 1
        %s204 = smul.addr %s203, 4
        %s205 = scalar_lea.vmem [#allocation7], %s204
        // Predicated region
        $region29: #{tpu_custom_call.1} parent=23 // pred_check
          %p206 = pneg %p83
        $region30: #{tpu_custom_call.1} parent=23 // pred_check_branch
          %208 = sbr.rel (%p206) target = $region32
        $region31: #{tpu_custom_call.1} parent=23 // pred_region
          %s210 = ssub.s32 64, 64
          %211 = vsyncadd %s202, %s210
          %s212 = sadd.s32 %s28, %s27
          %s213 = smul.addr %s212, 64
          %s214 = scalar_lea.hbm %s2, %s213
          %s216 = sshll.u32 %s205, 4
          %s217 = int_to_ptr.vmem [resolvable:$true] %s216
          %219 = dma.vmem_to_hbm [thread:$0]  %s217, 64, %s214, %s202
        $region32: #{tpu_custom_call.1} parent=23 // pred_fallthru
          _
      $region24: #{tpu_custom_call.1} parent=5 // pred_fallthru
        _
      %p220 = scmp.le.s32.totalorder 2, %s18
      // Predicated region
      $region33: #{tpu_custom_call.1} parent=5 // pred_check
        %p221 = pneg %p220
      $region34: #{tpu_custom_call.1} parent=5 // pred_check_branch
        %223 = sbr.rel (%p221) target = $region36
      $region35: #{tpu_custom_call.1} parent=5 // pred_region
        %s224 = ssub.s32 %s18, 2
        // Predicated region
        $region37: #{tpu_custom_call.1} parent=35 // pred_check
          %p225 = pneg %p89
        $region38: #{tpu_custom_call.1} parent=35 // pred_check_branch
          %227 = sbr.rel (%p225) target = $region40
        $region39: #{tpu_custom_call.1} parent=35 // pred_region
          %s228 = sand.u32 %s74, 1
          %s229 = scalar_lea.sflag [#allocation6], %s228
          %s230 = sand.u32 %s74, 1
          %s231 = smul.addr %s230, 4
          %s232 = scalar_lea.vmem [#allocation7], %s231
          %233 = dma.done %s229, 64
        $region40: #{tpu_custom_call.1} parent=35 // pred_fallthru
          _
      $region36: #{tpu_custom_call.1} parent=5 // pred_fallthru
        _
    $region6: #{tpu_custom_call.1} parent=1 // loop_footer
      %s22 = sadd.s32 1, %s18
    $region7: #{tpu_custom_call.1} parent=1 // loop_footer_branch
      %17 = sbr.rel target = $region3
    $region8: #{tpu_custom_call.1} parent=1 // loop_exit
      _
    %234 = vsyncpa [#allocation5], 1
    %s235 = scalar_lea.sflag [#allocation5], 1
    %236 = vsyncpa %s235, 1
    %237 = vsyncpa [#allocation6], 1
    %s238 = scalar_lea.sflag [#allocation6], 1
    %239 = vsyncpa %s238, 1

</llo_original>
